<compile_context>
chip_gen: v7x
topology: tpu7x:2x2x1
jax: 0.10.0
libtpu: 0.0.40
codegen_flags: <defaults>
</compile_context>

<pallas_src>
import jax
import jax.numpy as jnp
from jax import lax
from jax.experimental import pallas as pl
from jax.experimental.pallas import tpu as pltpu


def _round_up(x: int, m: int) -> int:
    return ((x + m - 1) // m) * m


def fasttext_kernel(text_ref, emb_ref, w_ref, b_ref, out_ref, acc_ref):
    # text_ref: (S, TB, 1) int32  token ids (seq leading, batch on sublanes)
    # emb_ref : (TV, Ep)  f32     vocab tile k of the zero-padded embedding table
    # w_ref   : (Ep, Op)  f32     fc weight, stored transposed (E x O), grid-invariant
    # b_ref   : (1,  Op)  f32     fc bias, grid-invariant
    # out_ref : (TB, Op)  f32     lane-dense output tile (written on the last vocab step)
    # acc_ref : (TB, Ep)  f32     scratch accumulator of sum_s emb[token_s]
    k = pl.program_id(1)
    S, TB, _ = text_ref.shape
    TV = emb_ref.shape[0]

    @pl.when(k == 0)
    def _():
        acc_ref[...] = jnp.zeros_like(acc_ref)

    tok = text_ref[...]                                                # (S, TB, 1) int32
    # Global vocab ids covered by this vocab tile, laid out on lanes.
    v_ids = lax.broadcasted_iota(jnp.int32, (S, TB, TV), 2) + k * TV   # (S, TB, TV)
    # One-hot in bf16 (values 0/1 are exact); largest intermediate at half width.
    onehot = (tok == v_ids).astype(jnp.bfloat16)                       # (S, TB, TV)
    # Sum over the leading seq axis: pure element-wise adds, result is already
    # (batch on sublanes, vocab on lanes). Exact in bf16 for S <= 256.
    counts = jnp.sum(onehot, axis=0)                                   # (TB, TV)

    # MXU: token counts x embedding tile, f32 accumulate into scratch.
    acc_ref[...] += jnp.dot(counts.astype(jnp.float32), emb_ref[...],
                            preferred_element_type=jnp.float32)        # (TB, Ep)

    @pl.when(k == pl.num_programs(1) - 1)
    def _():
        # 1/S applied to the small (TB, Ep) tile, not the (TB, TV) counts.
        # NOTE: S is the kernel-visible block size == true sequence length (S is never
        # padded); if S were ever padded this must become an SMEM scalar argument.
        pooled = acc_ref[...] * (1.0 / S)                              # (TB, Ep)
        out = jnp.dot(pooled, w_ref[...],
                      preferred_element_type=jnp.float32) + b_ref[...]  # (TB, Op)
        out_ref[...] = out.astype(out_ref.dtype)


def fasttext_forward(text, emb_table, w, b, *, batch_tile=128, vocab_tile=512):
    """text: (S, B) int32 seq-first; emb_table: (V, E); w: (E, O); b: (1, O)."""
    S, B = text.shape
    V, E = emb_table.shape
    O = w.shape[1]
    # bf16 counts are exact only up to 256 repeats of a token.
    assert S <= 256, "sequence length must be <= 256 for exact bf16 counts"

    # ---- tile / padding choices -------------------------------------------------
    Bp = _round_up(B, 8)
    TB = min(batch_tile, Bp)
    # Keep >= 2 batch grid steps when possible so v7x's second TensorCore is used
    # (no-op on v5e/v6e which have a single TC).
    if Bp // TB < 2 and Bp >= 16:
        TB = _round_up(Bp // 2, 8)
    Bp = _round_up(Bp, TB)

    Vp = _round_up(V, 128)
    TV = min(vocab_tile, Vp)          # vocab reduction tile (streams from HBM)
    Vp = _round_up(Vp, TV)

    Ep = _round_up(E, 128)
    Op = _round_up(O, 128)

    # ---- zero-padding (value preserving) ----------------------------------------
    # Token ids as (S, Bp, 1): seq leading, batch on sublanes, lane dim 1 so the
    # in-kernel vocab compare broadcasts across lanes without relayout.
    text_p = jnp.pad(text.astype(jnp.int32), ((0, 0), (0, Bp - B)))[:, :, None]
    emb_p = jnp.pad(emb_table, ((0, Vp - V), (0, Ep - E)))
    w_p = jnp.pad(w, ((0, Ep - E), (0, Op - O)))
    b_p = jnp.pad(b, ((0, 0), (0, Op - O)))

    grid = (Bp // TB, Vp // TV)       # (batch tiles, vocab reduction steps)

    # ---- explicit VMEM budget (v5e default scoped limit is only 16 MiB) ---------
    text_buf = S * _round_up(TB, 8) * 128 * 4          # lane dim padded to 128
    emb_buf = TV * Ep * 4
    w_buf = Ep * Op * 4
    b_buf = 8 * Op * 4
    out_buf = TB * Op * 4
    acc_buf = TB * Ep * 4
    onehot_buf = S * TB * TV * 2                       # bf16 intermediate
    est = 2 * text_buf + 2 * emb_buf + w_buf + b_buf + 2 * out_buf + acc_buf + onehot_buf
    vmem_limit = min(max(int(1.5 * est), 32 * 1024 * 1024), 64 * 1024 * 1024)

    out_p = pl.pallas_call(
        fasttext_kernel,
        out_shape=jax.ShapeDtypeStruct((Bp, Op), jnp.float32),
        grid_spec=pltpu.PrefetchScalarGridSpec(
            num_scalar_prefetch=0,
            grid=grid,
            in_specs=[
                # token ids: fixed per batch tile, reused across all vocab steps
                pl.BlockSpec((S, TB, 1), lambda i, k: (0, i, 0)),
                # embedding table: streamed per vocab step (double-buffered by default)
                pl.BlockSpec((TV, Ep), lambda i, k: (k, 0)),
                # fc weight / bias: grid-invariant -> single-buffered
                pl.BlockSpec((Ep, Op), lambda i, k: (0, 0),
                             pipeline_mode=pl.Buffered(1)),
                pl.BlockSpec((1, Op), lambda i, k: (0, 0),
                             pipeline_mode=pl.Buffered(1)),
            ],
            out_specs=pl.BlockSpec((TB, Op), lambda i, k: (i, 0)),
            scratch_shapes=[pltpu.VMEM((TB, Ep), jnp.float32)],
        ),
        compiler_params=pltpu.CompilerParams(
            dimension_semantics=("parallel", "arbitrary"),  # batch parallel, vocab reduce
            vmem_limit_bytes=vmem_limit,
        ),
    )(text_p, emb_p, w_p, b_p)

    return out_p[:B, :O]


if __name__ == "__main__":
    # Small, deterministic config.
    vocab_size = 50
    embedding_dim = 32
    output_dim = 8
    seq_len = 8
    batch = 2

    key = jax.random.PRNGKey(0)
    k_emb, k_w, k_b, k_txt = jax.random.split(key, 4)

    # Deterministic synthetic parameters (no checkpoint).
    emb_table = jax.random.normal(k_emb, (vocab_size, embedding_dim), dtype=jnp.float32)
    # PyTorch nn.Linear weight is (O, E); we store its transpose (E, O).
    w = jax.random.normal(k_w, (embedding_dim, output_dim), dtype=jnp.float32) * 0.1
    b = jax.random.normal(k_b, (1, output_dim), dtype=jnp.float32) * 0.1

    # Token ids, seq-first (S, B) as implied by `embedded.mean(dim=0)`.
    text = jax.random.randint(k_txt, (seq_len, batch), 0, vocab_size, dtype=jnp.int32)

    out = fasttext_forward(text, emb_table, w, b)
    out = jax.block_until_ready(out)

    # Pure-JAX reference.
    ref = jnp.take(emb_table, text, axis=0).mean(axis=0) @ w + b
    assert out.shape == (batch, output_dim)
    assert jnp.allclose(out, ref, atol=1e-5, rtol=1e-5)

    print("KERNEL_OK")
</pallas_src>

<mosaic_0001>
module attributes {stable_mosaic.version = 11 : i64} {
  func.func @fasttext_kernel(%arg0: i32, %arg1: i32, %arg2: memref<8x8x1xi32, #tpu.memory_space<vmem>>, %arg3: memref<128x128xf32, #tpu.memory_space<vmem>>, %arg4: memref<128x128xf32, #tpu.memory_space<vmem>>, %arg5: memref<1x128xf32, #tpu.memory_space<vmem>>, %arg6: memref<8x128xf32, #tpu.memory_space<vmem>>, %arg7: memref<8x128xf32, #tpu.memory_space<vmem>>) attributes {dimension_semantics = [#tpu.dimension_semantics<parallel>, #tpu.dimension_semantics<arbitrary>], iteration_bounds = array<i64: 1, 1>, scalar_prefetch = 0 : i64, scratch_operands = 1 : i64, tpu.core_type = #tpu.core_type<tc>, window_params = [{transform_indices = @transform_0, window_bounds = array<i64: 8, 8, 1>}, {transform_indices = @transform_1, window_bounds = array<i64: 128, 128>}, {pipeline_mode = #tpu.pipeline_mode<synchronous>, transform_indices = @transform_2, window_bounds = array<i64: 128, 128>}, {pipeline_mode = #tpu.pipeline_mode<synchronous>, transform_indices = @transform_3, window_bounds = array<i64: 1, 128>}, {transform_indices = @transform_4, window_bounds = array<i64: 8, 128>}]} {
    %c0_i32 = arith.constant 0 : i32
    %0 = arith.cmpi eq, %arg1, %c0_i32 : i32
    %1 = arith.extui %0 : i1 to i32
    %c0_i32_0 = arith.constant 0 : i32
    %2 = arith.cmpi ne, %1, %c0_i32_0 : i32
    scf.if %2 {
      %cst_12 = arith.constant 0.000000e+00 : f32
      %25 = vector.broadcast %cst_12 : f32 to vector<8x128xf32>
      %c0_13 = arith.constant 0 : index
      %c0_14 = arith.constant 0 : index
      %26 = vector.load %arg7[%c0_13, %c0_14] : memref<8x128xf32, #tpu.memory_space<vmem>>, vector<8x128xf32>
      tpu.vector_store %arg7[%c0_13, %c0_14], %25 {strides = array<i32>} : memref<8x128xf32, #tpu.memory_space<vmem>>, vector<8x128xf32>,
    } else {
    }
    %c0 = arith.constant 0 : index
    %c0_1 = arith.constant 0 : index
    %c0_2 = arith.constant 0 : index
    %3 = vector.load %arg2[%c0, %c0_1, %c0_2] : memref<8x8x1xi32, #tpu.memory_space<vmem>>, vector<8x8x1xi32>
    %4 = tpu.iota {dimensions = array<i32: 2>} : vector<8x8x128xi32>
    %c128_i32 = arith.constant 128 : i32
    %5 = arith.muli %arg1, %c128_i32 : i32
    %6 = vector.broadcast %5 : i32 to vector<8x8x128xi32>
    %7 = arith.addi %4, %6 : vector<8x8x128xi32>
    %8 = vector.broadcast %3 : vector<8x8x1xi32> to vector<8x8x128xi32>
    %9 = arith.cmpi eq, %8, %7 : vector<8x8x128xi32>
    %10 = arith.extui %9 : vector<8x8x128xi1> to vector<8x8x128xi32>
    %11 = arith.sitofp %10 : vector<8x8x128xi32> to vector<8x8x128xf32>
    %12 = arith.truncf %11 : vector<8x8x128xf32> to vector<8x8x128xbf16>
    %13 = arith.extf %12 : vector<8x8x128xbf16> to vector<8x8x128xf32>
    %cst = arith.constant dense<0.000000e+00> : vector<8x128xf32>
    %14 = vector.multi_reduction <add>, %13, %cst [0] : vector<8x8x128xf32> to vector<8x128xf32>
    %15 = arith.truncf %14 : vector<8x128xf32> to vector<8x128xbf16>
    %c0_3 = arith.constant 0 : index
    %c0_4 = arith.constant 0 : index
    %16 = vector.load %arg7[%c0_3, %c0_4] : memref<8x128xf32, #tpu.memory_space<vmem>>, vector<8x128xf32>
    %17 = arith.extf %15 : vector<8x128xbf16> to vector<8x128xf32>
    %c0_5 = arith.constant 0 : index
    %c0_6 = arith.constant 0 : index
    %18 = vector.load %arg3[%c0_5, %c0_6] : memref<128x128xf32, #tpu.memory_space<vmem>>, vector<128x128xf32>
    %cst_7 = arith.constant dense<0.000000e+00> : vector<8x128xf32>
    %19 = tpu.matmul %17, %18, %cst_7 {dimension_numbers = #tpu.dot_dimension_numbers<[1], [0], [0], [1], [0, 0, 1, 1], [], []>} : vector<8x128xf32>, vector<128x128xf32>, vector<8x128xf32> -> vector<8x128xf32>
    %20 = arith.addf %16, %19 : vector<8x128xf32>
    %c0_8 = arith.constant 0 : index
    %c0_9 = arith.constant 0 : index
    %21 = vector.load %arg7[%c0_8, %c0_9] : memref<8x128xf32, #tpu.memory_space<vmem>>, vector<8x128xf32>
    tpu.vector_store %arg7[%c0_8, %c0_9], %20 {strides = array<i32>} : memref<8x128xf32, #tpu.memory_space<vmem>>, vector<8x128xf32>,
    %c0_i32_10 = arith.constant 0 : i32
    %22 = arith.cmpi eq, %arg1, %c0_i32_10 : i32
    %23 = arith.extui %22 : i1 to i32
    %c0_i32_11 = arith.constant 0 : i32
    %24 = arith.cmpi ne, %23, %c0_i32_11 : i32
    scf.if %24 {
      %c0_12 = arith.constant 0 : index
      %c0_13 = arith.constant 0 : index
      %25 = vector.load %arg7[%c0_12, %c0_13] : memref<8x128xf32, #tpu.memory_space<vmem>>, vector<8x128xf32>
      %cst_14 = arith.constant 1.250000e-01 : f32
      %26 = vector.broadcast %cst_14 : f32 to vector<8x128xf32>
      %27 = arith.mulf %25, %26 : vector<8x128xf32>
      %c0_15 = arith.constant 0 : index
      %c0_16 = arith.constant 0 : index
      %28 = vector.load %arg4[%c0_15, %c0_16] : memref<128x128xf32, #tpu.memory_space<vmem>>, vector<128x128xf32>
      %cst_17 = arith.constant dense<0.000000e+00> : vector<8x128xf32>
      %29 = tpu.matmul %27, %28, %cst_17 {dimension_numbers = #tpu.dot_dimension_numbers<[1], [0], [0], [1], [0, 0, 1, 1], [], []>} : vector<8x128xf32>, vector<128x128xf32>, vector<8x128xf32> -> vector<8x128xf32>
      %c0_18 = arith.constant 0 : index
      %c0_19 = arith.constant 0 : index
      %30 = vector.load %arg5[%c0_18, %c0_19] : memref<1x128xf32, #tpu.memory_space<vmem>>, vector<1x128xf32>
      %31 = vector.broadcast %30 : vector<1x128xf32> to vector<8x128xf32>
      %32 = arith.addf %29, %31 : vector<8x128xf32>
      %c0_20 = arith.constant 0 : index
      %c0_21 = arith.constant 0 : index
      %33 = vector.load %arg6[%c0_20, %c0_21] : memref<8x128xf32, #tpu.memory_space<vmem>>, vector<8x128xf32>
      tpu.vector_store %arg6[%c0_20, %c0_21], %32 {strides = array<i32>} : memref<8x128xf32, #tpu.memory_space<vmem>>, vector<8x128xf32>,
    } else {
    }
    return
  }
  func.func @transform_0(%arg0: i32, %arg1: i32) -> (i32, i32, i32) {
    %c0_i32 = arith.constant 0 : i32
    %c0_i32_0 = arith.constant 0 : i32
    %c0_i32_1 = arith.constant 0 : i32
    return %c0_i32, %arg0, %c0_i32_0 : i32, i32, i32
  }
  func.func @transform_1(%arg0: i32, %arg1: i32) -> (i32, i32) {
    %c0_i32 = arith.constant 0 : i32
    %c0_i32_0 = arith.constant 0 : i32
    return %arg1, %c0_i32 : i32, i32
  }
  func.func @transform_2(%arg0: i32, %arg1: i32) -> (i32, i32) {
    %c0_i32 = arith.constant 0 : i32
    %c0_i32_0 = arith.constant 0 : i32
    %c0_i32_1 = arith.constant 0 : i32
    return %c0_i32, %c0_i32_0 : i32, i32
  }
  func.func @transform_3(%arg0: i32, %arg1: i32) -> (i32, i32) {
    %c0_i32 = arith.constant 0 : i32
    %c0_i32_0 = arith.constant 0 : i32
    %c0_i32_1 = arith.constant 0 : i32
    return %c0_i32, %c0_i32_0 : i32, i32
  }
  func.func @transform_4(%arg0: i32, %arg1: i32) -> (i32, i32) {
    %c0_i32 = arith.constant 0 : i32
    %c0_i32_0 = arith.constant 0 : i32
    return %arg0, %c0_i32 : i32, i32
  }
}

</mosaic_0001>

<llo_original>
// kernel: tpu_custom_call.1
$region0: #{tpu_custom_call.1}
  #allocation0 [shape = 'u32[]', space=smem, size = 0x4, offset = 0x4, fixed_abs, tag = 'smem constant byte address 0x4 - core index']
  #allocation1 [shape = 'u32[144,128]{1,0:T(1,128)}', space=vmem, size = 0x12000, scoped, tag = 'internal scratch']
  #allocation2 [shape = 'f32[8,128]{1,0:T(8,128)}', space=vmem, size = 0x1000, scoped, tag = 'scratch operand']
  %s0 = inlined_call_operand.vmem [shape: s32[8,8,1], index: 0, kind: input, shape index: {}]
  %s1 = inlined_call_operand.hbm [shape: f32[128,128], index: 1, kind: input, shape index: {}]
  %s2 = inlined_call_operand.hbm [shape: f32[128,128], index: 2, kind: input, shape index: {}]
  %s3 = inlined_call_operand.vmem [shape: f32[1,128], index: 3, kind: input, shape index: {}]
  %s4 = inlined_call_operand.hbm [shape: f32[8,128], index: 4, kind: output, shape index: {}]
  %s5 = sld [smem:[#allocation0]]
  $region42: #{tpu_custom_call.1} parent=0
    _
  %s7 = ssub.s32 1, %s5
  %s8 = scalar_select 0, %s7, %s5
  $region1: #{tpu_custom_call.1} parent=0
    #allocation3 [shape = 'u8[65536]{0}', space=vmem, size = 0x10000, scoped, tag = 'input window, operand 1, single buffered']
    #allocation4 [shape = 's32[1]{0}', space=sflag, size = 0x4, scoped, tag = 'scoped memory for tpu_custom_call.1']
    #allocation5 [shape = 's32[1]{0}', space=sflag, size = 0x4, scoped, tag = 'scoped memory for tpu_custom_call.1']
    #allocation6 [shape = 'u8[65536]{0}', space=vmem, size = 0x10000, scoped, tag = 'input window, operand 2, single buffered']
    #allocation7 [shape = 's32[1]{0}', space=sflag, size = 0x4, scoped, tag = 'scoped memory for tpu_custom_call.1']
    #allocation8 [shape = 'u8[4096]{0}', space=vmem, size = 0x1000, scoped, tag = 'output window, operand 0, single buffered']
    %9 = vsyncpa [#allocation4], 0
    %10 = vsyncpa [#allocation7], 0
    %11 = vsyncpa [#allocation5], 0
    // Predicated region
    $region2: #{tpu_custom_call.1} parent=1 // pred_check
      _
    $region3: #{tpu_custom_call.1} parent=1 // pred_check_branch
      %13 = sbr.rel (0) target = $region5
    $region4: #{tpu_custom_call.1} parent=1 // pred_region
      _
    $region5: #{tpu_custom_call.1} parent=1 // pred_fallthru
      _
    // Predicated region
    $region6: #{tpu_custom_call.1} parent=1 // pred_check
      _
    $region7: #{tpu_custom_call.1} parent=1 // pred_check_branch
      %15 = sbr.rel (0) target = $region9
    $region8: #{tpu_custom_call.1} parent=1 // pred_region
      %s17 = ssub.s32 2048, 2048
      %18 = vsyncadd [#allocation4], %s17
      %s19 = sshll.u32 [#allocation3], 4
      %s20 = int_to_ptr.vmem [resolvable:$true] %s19
      %25 = dma.hbm_to_vmem [thread:$0]  %s1, 2048, %s20, [#allocation4], 128, 128, 8
    $region9: #{tpu_custom_call.1} parent=1 // pred_fallthru
      _
    // Predicated region
    $region10: #{tpu_custom_call.1} parent=1 // pred_check
      _
    $region11: #{tpu_custom_call.1} parent=1 // pred_check_branch
      %27 = sbr.rel (0) target = $region13
    $region12: #{tpu_custom_call.1} parent=1 // pred_region
      %s29 = ssub.s32 2048, 2048
      %30 = vsyncadd [#allocation7], %s29
      %s31 = sshll.u32 [#allocation6], 4
      %s32 = int_to_ptr.vmem [resolvable:$true] %s31
      %37 = dma.hbm_to_vmem [thread:$0]  %s2, 2048, %s32, [#allocation7], 128, 128, 8
    $region13: #{tpu_custom_call.1} parent=1 // pred_fallthru
      _
    // Predicated region
    $region14: #{tpu_custom_call.1} parent=1 // pred_check
      _
    $region15: #{tpu_custom_call.1} parent=1 // pred_check_branch
      %39 = sbr.rel (0) target = $region17
    $region16: #{tpu_custom_call.1} parent=1 // pred_region
      _
    $region17: #{tpu_custom_call.1} parent=1 // pred_fallthru
      _
    // Predicated region
    $region18: #{tpu_custom_call.1} parent=1 // pred_check
      _
    $region19: #{tpu_custom_call.1} parent=1 // pred_check_branch
      %41 = sbr.rel (0) target = $region21
    $region20: #{tpu_custom_call.1} parent=1 // pred_region
      %42 = dma.done [#allocation4], 2048
    $region21: #{tpu_custom_call.1} parent=1 // pred_fallthru
      _
    // Predicated region
    $region22: #{tpu_custom_call.1} parent=1 // pred_check
      _
    $region23: #{tpu_custom_call.1} parent=1 // pred_check_branch
      %44 = sbr.rel (0) target = $region25
    $region24: #{tpu_custom_call.1} parent=1 // pred_region
      %45 = dma.done [#allocation7], 2048
    $region25: #{tpu_custom_call.1} parent=1 // pred_fallthru
      _
    %p46 = scmp.eq.s32.totalorder 0, 0
    // Predicated region
    $region26: #{tpu_custom_call.1} parent=1 // pred_check
      %p47 = pneg %p46
    $region27: #{tpu_custom_call.1} parent=1 // pred_check_branch
      %49 = sbr.rel (%p47) target = $region29
    $region28: #{tpu_custom_call.1} parent=1 // pred_region
      %50 = vst [vmem:[#allocation2] sm:$0xff] 0.0
    $region29: #{tpu_custom_call.1} parent=1 // pred_fallthru
      _
    %v51 = vld [vmem:[%s0] sm:$0xff]
    %v52 = vld [vmem:[%s0 + $0x8] sm:$0xff]
    %v53 = vld [vmem:[%s0 + $0x10] sm:$0xff]
    %v54 = vld [vmem:[%s0 + $0x18] sm:$0xff]
    %v55 = vld [vmem:[%s0 + $0x20] sm:$0xff]
    %v56 = vld [vmem:[%s0 + $0x28] sm:$0xff]
    %v57 = vld [vmem:[%s0 + $0x30] sm:$0xff]
    %v58 = vld [vmem:[%s0 + $0x38] sm:$0xff]
    %v59 = vlaneseq
    %v60 = vand.u32 %v59, 127
    %s61 = smul.u32 0, 128
    %v62 = vstv %s61
    %v63 = vadd.s32 %v60, %v62
    %64 = vset.pattern.permute.xlu0 0
    %65 = vperm.xlu0 %64, %v51
    %v66 = vpop.permute.xlu0 %65
    %67 = vset.pattern.permute.xlu0 0
    %68 = vperm.xlu0 %67, %v52
    %v69 = vpop.permute.xlu0 %68
    %70 = vset.pattern.permute.xlu0 0
    %71 = vperm.xlu0 %70, %v53
    %v72 = vpop.permute.xlu0 %71
    %73 = vset.pattern.permute.xlu0 0
    %74 = vperm.xlu0 %73, %v54
    %v75 = vpop.permute.xlu0 %74
    %76 = vset.pattern.permute.xlu0 0
    %77 = vperm.xlu0 %76, %v55
    %v78 = vpop.permute.xlu0 %77
    %79 = vset.pattern.permute.xlu0 0
    %80 = vperm.xlu0 %79, %v56
    %v81 = vpop.permute.xlu0 %80
    %82 = vset.pattern.permute.xlu0 0
    %83 = vperm.xlu0 %82, %v57
    %v84 = vpop.permute.xlu0 %83
    %85 = vset.pattern.permute.xlu0 0
    %86 = vperm.xlu0 %85, %v58
    %v87 = vpop.permute.xlu0 %86
    %vm88 = vcmp.eq.s32.totalorder %v66, %v63
    %vm89 = vcmp.eq.s32.totalorder %v69, %v63
    %vm90 = vcmp.eq.s32.totalorder %v72, %v63
    %vm91 = vcmp.eq.s32.totalorder %v75, %v63
    %vm92 = vcmp.eq.s32.totalorder %v78, %v63
    %vm93 = vcmp.eq.s32.totalorder %v81, %v63
    %vm94 = vcmp.eq.s32.totalorder %v84, %v63
    %vm95 = vcmp.eq.s32.totalorder %v87, %v63
    %v96 = vsel %vm88, 1, 0
    %v97 = vsel %vm89, 1, 0
    %v98 = vsel %vm90, 1, 0
    %v99 = vsel %vm91, 1, 0
    %v100 = vsel %vm92, 1, 0
    %v101 = vsel %vm93, 1, 0
    %v102 = vsel %vm94, 1, 0
    %v103 = vsel %vm95, 1, 0
    %v104 = vcvt.s32.f32 %v96
    %v105 = vcvt.s32.f32 %v97
    %v106 = vcvt.s32.f32 %v98
    %v107 = vcvt.s32.f32 %v99
    %v108 = vcvt.s32.f32 %v100
    %v109 = vcvt.s32.f32 %v101
    %v110 = vcvt.s32.f32 %v102
    %v111 = vcvt.s32.f32 %v103
    %v112 = vpack.c.bf16 %v104, %v104
    %v113 = vpack.c.bf16 %v105, %v105
    %v114 = vpack.c.bf16 %v106, %v106
    %v115 = vpack.c.bf16 %v107, %v107
    %v116 = vpack.c.bf16 %v108, %v108
    %v117 = vpack.c.bf16 %v109, %v109
    %v118 = vpack.c.bf16 %v110, %v110
    %v119 = vpack.c.bf16 %v111, %v111
    %v120 = vunpack.c.l.bf16 %v112
    %v121 = vunpack.c.l.bf16 %v113
    %v122 = vunpack.c.l.bf16 %v114
    %v123 = vunpack.c.l.bf16 %v115
    %v124 = vunpack.c.l.bf16 %v116
    %v125 = vunpack.c.l.bf16 %v117
    %v126 = vunpack.c.l.bf16 %v118
    %v127 = vunpack.c.l.bf16 %v119
    %v128 = vadd.f32 %v120, %v121
    %v129 = vadd.f32 %v128, %v122
    %v130 = vadd.f32 %v129, %v123
    %v131 = vadd.f32 %v130, %v124
    %v132 = vadd.f32 %v131, %v125
    %v133 = vadd.f32 %v132, %v126
    %v134 = vadd.f32 %v133, %v127
    %v135 = vpack.c.bf16 %v134, %v134
    %v136 = vld [vmem:[#allocation2] sm:$0xff]
    %v137 = vunpack.c.l.bf16 %v135
    %v138 = vld [vmem:[#allocation3] sm:$0xff]
    %v139 = vld [vmem:[#allocation3 + $0x8] sm:$0xff]
    %v140 = vld [vmem:[#allocation3 + $0x10] sm:$0xff]
    %v141 = vld [vmem:[#allocation3 + $0x18] sm:$0xff]
    %v142 = vld [vmem:[#allocation3 + $0x20] sm:$0xff]
    %v143 = vld [vmem:[#allocation3 + $0x28] sm:$0xff]
    %v144 = vld [vmem:[#allocation3 + $0x30] sm:$0xff]
    %v145 = vld [vmem:[#allocation3 + $0x38] sm:$0xff]
    %v146 = vld [vmem:[#allocation3 + $0x40] sm:$0xff]
    %v147 = vld [vmem:[#allocation3 + $0x48] sm:$0xff]
    %v148 = vld [vmem:[#allocation3 + $0x50] sm:$0xff]
    %v149 = vld [vmem:[#allocation3 + $0x58] sm:$0xff]
    %v150 = vld [vmem:[#allocation3 + $0x60] sm:$0xff]
    %v151 = vld [vmem:[#allocation3 + $0x68] sm:$0xff]
    %v152 = vld [vmem:[#allocation3 + $0x70] sm:$0xff]
    %v153 = vld [vmem:[#allocation3 + $0x78] sm:$0xff]
    %154 = vmatprep.subr.mxu0 0.0
    %155 = vmatpush1.msra.mxu0 %v138
    %156 = vmatprep.subr.mxu0 0.0
    %157 = vmatpush1.msra.mxu0 %v139
    %158 = vmatprep.subr.mxu0 0.0
    %159 = vmatpush1.msra.mxu0 %v140
    %160 = vmatprep.subr.mxu0 0.0
    %161 = vmatpush1.msra.mxu0 %v141
    %162 = vmatprep.subr.mxu0 0.0
    %163 = vmatpush1.msra.mxu0 %v142
    %164 = vmatprep.subr.mxu0 0.0
    %165 = vmatpush1.msra.mxu0 %v143
    %166 = vmatprep.subr.mxu0 0.0
    %167 = vmatpush1.msra.mxu0 %v144
    %168 = vmatprep.subr.mxu0 0.0
    %169 = vmatpush1.msra.mxu0 %v145
    %170 = vmatprep.subr.mxu0 0.0
    %171 = vmatpush1.msra.mxu0 %v146
    %172 = vmatprep.subr.mxu0 0.0
    %173 = vmatpush1.msra.mxu0 %v147
    %174 = vmatprep.subr.mxu0 0.0
    %175 = vmatpush1.msra.mxu0 %v148
    %176 = vmatprep.subr.mxu0 0.0
    %177 = vmatpush1.msra.mxu0 %v149
    %178 = vmatprep.subr.mxu0 0.0
    %179 = vmatpush1.msra.mxu0 %v150
    %180 = vmatprep.subr.mxu0 0.0
    %181 = vmatpush1.msra.mxu0 %v151
    %182 = vmatprep.subr.mxu0 0.0
    %183 = vmatpush1.msra.mxu0 %v152
    %184 = vmatprep.subr.mxu0 0.0
    %185 = vmatpush1.msra.mxu0 %v153
    %186 = vmatprep.subr.mxu0 0.0
    %187 = vmatpush1.msra.mxu0 0.0
    %188 = vmatprep.subr.mxu0 0.0
    %189 = vmatpush1.msra.mxu0 0.0
    %190 = vmatprep.subr.mxu0 0.0
    %191 = vmatpush1.msra.mxu0 0.0
    %192 = vmatprep.subr.mxu0 0.0
    %193 = vmatpush1.msra.mxu0 0.0
    %194 = vmatprep.subr.mxu0 0.0
    %195 = vmatpush1.msra.mxu0 0.0
    %196 = vmatprep.subr.mxu0 0.0
    %197 = vmatpush1.msra.mxu0 0.0
    %198 = vmatprep.subr.mxu0 0.0
    %199 = vmatpush1.msra.mxu0 0.0
    %200 = vmatprep.subr.mxu0 0.0
    %201 = vmatpush1.msra.mxu0 0.0
    %202 = vmatprep.subr.mxu0 0.0
    %203 = vmatpush1.msra.mxu0 0.0
    %204 = vmatprep.subr.mxu0 0.0
    %205 = vmatpush1.msra.mxu0 0.0
    %206 = vmatprep.subr.mxu0 0.0
    %207 = vmatpush1.msra.mxu0 0.0
    %208 = vmatprep.subr.mxu0 0.0
    %209 = vmatpush1.msra.mxu0 0.0
    %210 = vmatprep.subr.mxu0 0.0
    %211 = vmatpush1.msra.mxu0 0.0
    %212 = vmatprep.subr.mxu0 0.0
    %213 = vmatpush1.msra.mxu0 0.0
    %214 = vmatprep.subr.mxu0 0.0
    %215 = vmatpush1.msra.mxu0 0.0
    %216 = vmatprep.subr.mxu0 0.0
    %217 = vmatpush1.msra.mxu0 0.0
    %218 = vmatprep.mubr.f32.mxu0 0.0
    %219 = vmatmul.mubr.f32.gmra.mrb[0].mxu0 %v137
    %v220 = vpop.f32.mrb[0].mxu0
    %v221 = vadd.f32 0.0, %v220
    %v222 = vpop.f32.mrb[0].mxu0
    %223 = vdwg.mxu0
    %v224 = vadd.f32 %v136, %v221
    %225 = vst [vmem:[#allocation2] sm:$0xff] %v224
    // Predicated region
    $region30: #{tpu_custom_call.1} parent=1 // pred_check
      %p226 = pneg %p46
    $region31: #{tpu_custom_call.1} parent=1 // pred_check_branch
      %228 = sbr.rel (%p226) target = $region33
    $region32: #{tpu_custom_call.1} parent=1 // pred_region
      %v229 = vld [vmem:[#allocation2] sm:$0xff]
      %v230 = vmul.f32 %v229, 0.125
      %v231 = vld [vmem:[#allocation6] sm:$0xff]
      %v232 = vld [vmem:[#allocation6 + $0x8] sm:$0xff]
      %v233 = vld [vmem:[#allocation6 + $0x10] sm:$0xff]
      %v234 = vld [vmem:[#allocation6 + $0x18] sm:$0xff]
      %v235 = vld [vmem:[#allocation6 + $0x20] sm:$0xff]
      %v236 = vld [vmem:[#allocation6 + $0x28] sm:$0xff]
      %v237 = vld [vmem:[#allocation6 + $0x30] sm:$0xff]
      %v238 = vld [vmem:[#allocation6 + $0x38] sm:$0xff]
      %v239 = vld [vmem:[#allocation6 + $0x40] sm:$0xff]
      %v240 = vld [vmem:[#allocation6 + $0x48] sm:$0xff]
      %v241 = vld [vmem:[#allocation6 + $0x50] sm:$0xff]
      %v242 = vld [vmem:[#allocation6 + $0x58] sm:$0xff]
      %v243 = vld [vmem:[#allocation6 + $0x60] sm:$0xff]
      %v244 = vld [vmem:[#allocation6 + $0x68] sm:$0xff]
      %v245 = vld [vmem:[#allocation6 + $0x70] sm:$0xff]
      %v246 = vld [vmem:[#allocation6 + $0x78] sm:$0xff]
      %v247 = vld [vmem:[%s3] sm:$0x1]
      %v249 = vlaneseq
      %v250 = vshrl.u32 %v249, 7
      %v251 = vsub.s32 0, %v250
      %v252 = vrot.slane %v247, %v251
      %254 = vmatprep.subr.mxu0 0.0
      %255 = vmatpush1.msra.mxu0 %v231
      %256 = vmatprep.subr.mxu0 0.0
      %257 = vmatpush1.msra.mxu0 %v232
      %258 = vmatprep.subr.mxu0 0.0
      %259 = vmatpush1.msra.mxu0 %v233
      %260 = vmatprep.subr.mxu0 0.0
      %261 = vmatpush1.msra.mxu0 %v234
      %262 = vmatprep.subr.mxu0 0.0
      %263 = vmatpush1.msra.mxu0 %v235
      %264 = vmatprep.subr.mxu0 0.0
      %265 = vmatpush1.msra.mxu0 %v236
      %266 = vmatprep.subr.mxu0 0.0
      %267 = vmatpush1.msra.mxu0 %v237
      %268 = vmatprep.subr.mxu0 0.0
      %269 = vmatpush1.msra.mxu0 %v238
      %270 = vmatprep.subr.mxu0 0.0
      %271 = vmatpush1.msra.mxu0 %v239
      %272 = vmatprep.subr.mxu0 0.0
      %273 = vmatpush1.msra.mxu0 %v240
      %274 = vmatprep.subr.mxu0 0.0
      %275 = vmatpush1.msra.mxu0 %v241
      %276 = vmatprep.subr.mxu0 0.0
      %277 = vmatpush1.msra.mxu0 %v242
      %278 = vmatprep.subr.mxu0 0.0
      %279 = vmatpush1.msra.mxu0 %v243
      %280 = vmatprep.subr.mxu0 0.0
      %281 = vmatpush1.msra.mxu0 %v244
      %282 = vmatprep.subr.mxu0 0.0
      %283 = vmatpush1.msra.mxu0 %v245
      %284 = vmatprep.subr.mxu0 0.0
      %285 = vmatpush1.msra.mxu0 %v246
      %286 = vmatprep.subr.mxu0 0.0
      %287 = vmatpush1.msra.mxu0 0.0
      %288 = vmatprep.subr.mxu0 0.0
      %289 = vmatpush1.msra.mxu0 0.0
      %290 = vmatprep.subr.mxu0 0.0
      %291 = vmatpush1.msra.mxu0 0.0
      %292 = vmatprep.subr.mxu0 0.0
      %293 = vmatpush1.msra.mxu0 0.0
      %294 = vmatprep.subr.mxu0 0.0
      %295 = vmatpush1.msra.mxu0 0.0
      %296 = vmatprep.subr.mxu0 0.0
      %297 = vmatpush1.msra.mxu0 0.0
      %298 = vmatprep.subr.mxu0 0.0
      %299 = vmatpush1.msra.mxu0 0.0
      %300 = vmatprep.subr.mxu0 0.0
      %301 = vmatpush1.msra.mxu0 0.0
      %302 = vmatprep.subr.mxu0 0.0
      %303 = vmatpush1.msra.mxu0 0.0
      %304 = vmatprep.subr.mxu0 0.0
      %305 = vmatpush1.msra.mxu0 0.0
      %306 = vmatprep.subr.mxu0 0.0
      %307 = vmatpush1.msra.mxu0 0.0
      %308 = vmatprep.subr.mxu0 0.0
      %309 = vmatpush1.msra.mxu0 0.0
      %310 = vmatprep.subr.mxu0 0.0
      %311 = vmatpush1.msra.mxu0 0.0
      %312 = vmatprep.subr.mxu0 0.0
      %313 = vmatpush1.msra.mxu0 0.0
      %314 = vmatprep.subr.mxu0 0.0
      %315 = vmatpush1.msra.mxu0 0.0
      %316 = vmatprep.subr.mxu0 0.0
      %317 = vmatpush1.msra.mxu0 0.0
      %318 = vmatprep.mubr.f32.mxu0 0.0
      %319 = vmatmul.mubr.f32.gmra.mrb[0].mxu0 %v230
      %v320 = vpop.f32.mrb[0].mxu0
      %v321 = vadd.f32 %v252, %v320
      %v322 = vpop.f32.mrb[0].mxu0
      %323 = vdwg.mxu0
      %324 = vst [vmem:[#allocation8] sm:$0xff] %v321
    $region33: #{tpu_custom_call.1} parent=1 // pred_fallthru
      _
    // Predicated region
    $region34: #{tpu_custom_call.1} parent=1 // pred_check
      _
    $region35: #{tpu_custom_call.1} parent=1 // pred_check_branch
      %326 = sbr.rel (0) target = $region37
    $region36: #{tpu_custom_call.1} parent=1 // pred_region
      %s328 = ssub.s32 128, 128
      %329 = vsyncadd [#allocation5], %s328
      %s331 = sshll.u32 [#allocation8], 4
      %s332 = int_to_ptr.vmem [resolvable:$true] %s331
      %334 = dma.vmem_to_hbm [thread:$0]  %s332, 128, %s4, [#allocation5]
    $region37: #{tpu_custom_call.1} parent=1 // pred_fallthru
      _
    // Predicated region
    $region38: #{tpu_custom_call.1} parent=1 // pred_check
      _
    $region39: #{tpu_custom_call.1} parent=1 // pred_check_branch
      %336 = sbr.rel (0) target = $region41
    $region40: #{tpu_custom_call.1} parent=1 // pred_region
      %337 = dma.done [#allocation5], 128
    $region41: #{tpu_custom_call.1} parent=1 // pred_fallthru
      _
    %338 = vsyncpa [#allocation4], 1
    %339 = vsyncpa [#allocation7], 1
    %340 = vsyncpa [#allocation5], 1

</llo_original>
